<compile_context>
chip_gen: v7x
topology: tpu7x:2x2x1
jax: 0.10.0
libtpu: 0.0.40
codegen_flags: <defaults>
</compile_context>

<pallas_src>
import jax
import jax.numpy as jnp
from jax.experimental import pallas as pl
from jax.experimental.pallas import tpu as pltpu

H_PAD = 128      # native lane width; hidden dims (15, 20) padded to this
N_OUT = 4        # logical number of actions (fc3 out features)
N_OUT_PAD = 8    # fc3 outputs padded to one sublane group


def _round_up(a, m):
    return ((a + m - 1) // m) * m


# --------------------------------------------------------------------------
# Fused 3-layer MLP kernel on one batch tile:
#   relu(relu(relu(x@W1+b1)@W2+b2)@W3+b3)
# fc1/fc2 run in the natural (TB, 128) orientation; fc3 is computed transposed
# so the stored output is a narrow lane-dense (8, TB) tile (batch in lanes).
# Padded rows/cols of the weights & biases are exactly zero, so relu(0)=0
# keeps the padding inert.
# --------------------------------------------------------------------------
def dqn_mlp_kernel(x_ref, w1_ref, w2_ref, w3t_ref, b12_ref, b3t_ref, o_ref):
    x = x_ref[...].astype(jnp.bfloat16)              # cast in-kernel (VPU slack)

    h1 = jnp.dot(x, w1_ref[...], preferred_element_type=jnp.float32)
    h1 = jnp.maximum(h1 + b12_ref[0:1, :], 0.0)      # f32 elementwise (v5e-safe)

    h2 = jnp.dot(h1.astype(jnp.bfloat16), w2_ref[...],
                 preferred_element_type=jnp.float32)
    h2 = jnp.maximum(h2 + b12_ref[1:2, :], 0.0)

    # fc3 transposed: o^T (8, TB) = W3^T (8, 128) contracted with h2 (TB, 128)
    # along the 128 in-feature dim (trans_b matmul; XLU has plenty of slack).
    o_t = jax.lax.dot_general(
        w3t_ref[...], h2.astype(jnp.bfloat16),
        dimension_numbers=(((1,), (1,)), ((), ())),
        preferred_element_type=jnp.float32)
    o_ref[...] = jnp.maximum(o_t + b3t_ref[...], 0.0)   # narrow lane-dense store


def dqn_forward(x, packed_params, *, tb=4096):
    """Fused DQN forward. x: (B, D_in) f32. Returns (B, 4) f32 Q-values."""
    w1p, w2p, w3t, b12, b3t = packed_params
    B, d_in = x.shape

    # Batch tiling: tb_eff is a multiple of 8 sublanes; for multi-step grids it
    # is a multiple of 128 so the (8, tb_eff) output block stays lane-aligned.
    b8 = _round_up(B, 8)
    if b8 <= 128:
        tb_eff = b8                                  # single full-array block
    else:
        b128 = _round_up(B, 128)
        tb_eff = min(_round_up(tb, 128), b128)
        if tb_eff >= b128:
            # Guarantee >=2 grid steps so v7x megacore can shard the batch axis.
            tb_eff = max(128, ((b128 // 2) // 128) * 128)
    nb = pl.cdiv(B, tb_eff)
    b_pad = nb * tb_eff

    flops = 2 * b_pad * (d_in * H_PAD + H_PAD * H_PAD + H_PAD * N_OUT_PAD)
    bytes_accessed = (B * d_in * 4
                      + (w1p.size + w2p.size + w3t.size) * 2
                      + (b12.size + b3t.size) * 4
                      + N_OUT_PAD * b_pad * 4)

    out_t = pl.pallas_call(
        dqn_mlp_kernel,
        out_shape=jax.ShapeDtypeStruct((N_OUT_PAD, b_pad), jnp.float32),
        grid_spec=pltpu.PrefetchScalarGridSpec(
            num_scalar_prefetch=0,
            grid=(nb,),
            in_specs=[
                pl.BlockSpec((tb_eff, d_in), lambda i: (i, 0)),   # x: streamed
                pl.BlockSpec(w1p.shape, lambda i: (0, 0)),        # resident
                pl.BlockSpec(w2p.shape, lambda i: (0, 0)),
                pl.BlockSpec(w3t.shape, lambda i: (0, 0)),
                pl.BlockSpec(b12.shape, lambda i: (0, 0)),
                pl.BlockSpec(b3t.shape, lambda i: (0, 0)),
            ],
            out_specs=pl.BlockSpec((N_OUT_PAD, tb_eff), lambda i: (0, i)),
        ),
        compiler_params=pltpu.CompilerParams(
            dimension_semantics=("parallel",),        # megacore on v7x
            vmem_limit_bytes=32 * 1024 * 1024),       # raise v5e's 16 MiB default
        cost_estimate=pl.CostEstimate(flops=flops, transcendentals=0,
                                      bytes_accessed=bytes_accessed),
    )(x, w1p, w2p, w3t, b12, b3t)

    # Rows >= N_OUT and lanes >= B (incl. ragged-block garbage) are sliced off.
    return jnp.transpose(out_t[:N_OUT, :B])


# --------------------------------------------------------------------------
# Parameter handling
# --------------------------------------------------------------------------
def init_params(key, input_dim):
    """PyTorch nn.Linear-style init; logical f32 params, W stored as (in, out)."""
    dims = [(input_dim, 15), (15, 20), (20, N_OUT)]
    params = []
    for fan_in, fan_out in dims:
        key, kw, kb = jax.random.split(key, 3)
        bound = 1.0 / jnp.sqrt(float(fan_in))
        w = jax.random.uniform(kw, (fan_in, fan_out), jnp.float32, -bound, bound)
        b = jax.random.uniform(kb, (fan_out,), jnp.float32, -bound, bound)
        params.extend([w, b])
    return tuple(params)


def pack_params(params):
    """Zero-pad hidden dims to 128 lanes, cast weights to bf16 (MXU inputs).
    fc3 weights are stored transposed (8, 128) for the narrow-output matmul;
    b1/b2 live in one (8,128) f32 buffer, b3 as an (8,1) f32 column."""
    w1, b1, w2, b2, w3, b3 = params
    d_in = w1.shape[0]

    def pad_w(w, rows, cols):
        buf = jnp.zeros((rows, cols), jnp.float32)
        return buf.at[:w.shape[0], :w.shape[1]].set(w).astype(jnp.bfloat16)

    w1p = pad_w(w1, d_in, H_PAD)
    w2p = pad_w(w2, H_PAD, H_PAD)
    w3t = pad_w(w3.T, N_OUT_PAD, H_PAD)              # transposed fc3 weights

    b12 = jnp.zeros((8, H_PAD), jnp.float32)
    b12 = b12.at[0, :b1.shape[0]].set(b1)
    b12 = b12.at[1, :b2.shape[0]].set(b2)

    b3t = jnp.zeros((N_OUT_PAD, 1), jnp.float32)
    b3t = b3t.at[:b3.shape[0], 0].set(b3)
    return (w1p, w2p, w3t, b12, b3t)


# --------------------------------------------------------------------------
# Pure-JAX references
# --------------------------------------------------------------------------
def dqn_forward_ref_matched(x, packed_params):
    """Same bf16-input / f32-accumulate math as the kernel (tight tolerance)."""
    w1p, w2p, w3t, b12, b3t = packed_params
    h = jnp.dot(x.astype(jnp.bfloat16), w1p, preferred_element_type=jnp.float32)
    h = jnp.maximum(h + b12[0:1], 0.0)
    h = jnp.dot(h.astype(jnp.bfloat16), w2p, preferred_element_type=jnp.float32)
    h = jnp.maximum(h + b12[1:2], 0.0)
    o_t = jnp.dot(w3t, h.astype(jnp.bfloat16).T, preferred_element_type=jnp.float32)
    o_t = jnp.maximum(o_t + b3t, 0.0)
    return o_t[:N_OUT].T


def dqn_forward_ref_f32(x, params):
    """Full-f32 reference of the original module forward."""
    w1, b1, w2, b2, w3, b3 = params
    h = jnp.maximum(x @ w1 + b1, 0.0)
    h = jnp.maximum(h @ w2 + b2, 0.0)
    return jnp.maximum(h @ w3 + b3, 0.0)   # NOTE: module applies ReLU on fc3 too


if __name__ == "__main__":
    key = jax.random.PRNGKey(0)
    key, kx, kp = jax.random.split(key, 3)

    batch = 8
    input_dim = 32          # input_dims[0]
    x = jax.random.normal(kx, (batch, input_dim), jnp.float32)

    params = init_params(kp, input_dim)
    packed = pack_params(params)

    out = dqn_forward(x, packed)
    out = jax.block_until_ready(out)
    assert out.shape == (batch, N_OUT)

    # Tight check against the precision-matched reference.
    ref_matched = dqn_forward_ref_matched(x, packed)
    assert jnp.allclose(out, ref_matched, atol=1e-4, rtol=1e-4)

    # Loose sanity check against the full-f32 module math (bf16 rounding).
    ref_f32 = dqn_forward_ref_f32(x, params)
    assert jnp.allclose(out, ref_f32, atol=5e-2, rtol=5e-2)

    print("KERNEL_OK")
</pallas_src>

<mosaic_0001>
module attributes {stable_mosaic.version = 11 : i64} {
  func.func @dqn_mlp_kernel(%arg0: i32, %arg1: memref<8x32xf32, #tpu.memory_space<vmem>>, %arg2: memref<32x128xbf16, #tpu.memory_space<vmem>>, %arg3: memref<128x128xbf16, #tpu.memory_space<vmem>>, %arg4: memref<8x128xbf16, #tpu.memory_space<vmem>>, %arg5: memref<8x128xf32, #tpu.memory_space<vmem>>, %arg6: memref<8x1xf32, #tpu.memory_space<vmem>>, %arg7: memref<8x8xf32, #tpu.memory_space<vmem>>) attributes {dimension_semantics = [#tpu.dimension_semantics<parallel>], iteration_bounds = array<i64: 1>, scalar_prefetch = 0 : i64, scratch_operands = 0 : i64, tpu.core_type = #tpu.core_type<tc>, window_params = [{transform_indices = @transform_0, window_bounds = array<i64: 8, 32>}, {pipeline_mode = #tpu.pipeline_mode<synchronous>, transform_indices = @transform_1, window_bounds = array<i64: 32, 128>}, {pipeline_mode = #tpu.pipeline_mode<synchronous>, transform_indices = @transform_2, window_bounds = array<i64: 128, 128>}, {pipeline_mode = #tpu.pipeline_mode<synchronous>, transform_indices = @transform_3, window_bounds = array<i64: 8, 128>}, {pipeline_mode = #tpu.pipeline_mode<synchronous>, transform_indices = @transform_4, window_bounds = array<i64: 8, 128>}, {pipeline_mode = #tpu.pipeline_mode<synchronous>, transform_indices = @transform_5, window_bounds = array<i64: 8, 1>}, {transform_indices = @transform_6, window_bounds = array<i64: 8, 8>}]} {
    %c0 = arith.constant 0 : index
    %c0_0 = arith.constant 0 : index
    %0 = vector.load %arg1[%c0, %c0_0] : memref<8x32xf32, #tpu.memory_space<vmem>>, vector<8x32xf32>
    %1 = arith.truncf %0 : vector<8x32xf32> to vector<8x32xbf16>
    %c0_1 = arith.constant 0 : index
    %c0_2 = arith.constant 0 : index
    %2 = vector.load %arg2[%c0_1, %c0_2] : memref<32x128xbf16, #tpu.memory_space<vmem>>, vector<32x128xbf16>
    %cst = arith.constant dense<0.000000e+00> : vector<8x128xf32>
    %3 = tpu.matmul %1, %2, %cst {dimension_numbers = #tpu.dot_dimension_numbers<[1], [0], [0], [1], [0, 0, 1, 1], [], []>} : vector<8x32xbf16>, vector<32x128xbf16>, vector<8x128xf32> -> vector<8x128xf32>
    %c0_3 = arith.constant 0 : index
    %c0_4 = arith.constant 0 : index
    %4 = vector.load %arg5[%c0_3, %c0_4] : memref<8x128xf32, #tpu.memory_space<vmem>>, vector<1x128xf32>
    %5 = vector.broadcast %4 : vector<1x128xf32> to vector<8x128xf32>
    %6 = arith.addf %3, %5 : vector<8x128xf32>
    %cst_5 = arith.constant 0.000000e+00 : f32
    %7 = vector.broadcast %cst_5 : f32 to vector<8x128xf32>
    %8 = arith.maximumf %6, %7 : vector<8x128xf32>
    %9 = arith.truncf %8 : vector<8x128xf32> to vector<8x128xbf16>
    %c0_6 = arith.constant 0 : index
    %c0_7 = arith.constant 0 : index
    %10 = vector.load %arg3[%c0_6, %c0_7] : memref<128x128xbf16, #tpu.memory_space<vmem>>, vector<128x128xbf16>
    %cst_8 = arith.constant dense<0.000000e+00> : vector<8x128xf32>
    %11 = tpu.matmul %9, %10, %cst_8 {dimension_numbers = #tpu.dot_dimension_numbers<[1], [0], [0], [1], [0, 0, 1, 1], [], []>} : vector<8x128xbf16>, vector<128x128xbf16>, vector<8x128xf32> -> vector<8x128xf32>
    %c1 = arith.constant 1 : index
    %c0_9 = arith.constant 0 : index
    %12 = vector.load %arg5[%c1, %c0_9] : memref<8x128xf32, #tpu.memory_space<vmem>>, vector<1x128xf32>
    %13 = vector.broadcast %12 : vector<1x128xf32> to vector<8x128xf32>
    %14 = arith.addf %11, %13 : vector<8x128xf32>
    %cst_10 = arith.constant 0.000000e+00 : f32
    %15 = vector.broadcast %cst_10 : f32 to vector<8x128xf32>
    %16 = arith.maximumf %14, %15 : vector<8x128xf32>
    %c0_11 = arith.constant 0 : index
    %c0_12 = arith.constant 0 : index
    %17 = vector.load %arg4[%c0_11, %c0_12] : memref<8x128xbf16, #tpu.memory_space<vmem>>, vector<8x128xbf16>
    %18 = arith.truncf %16 : vector<8x128xf32> to vector<8x128xbf16>
    %cst_13 = arith.constant dense<0.000000e+00> : vector<8x8xf32>
    %19 = tpu.matmul %17, %18, %cst_13 {dimension_numbers = #tpu.dot_dimension_numbers<[1], [1], [0], [0], [0, 0, 1, 0], [], []>} : vector<8x128xbf16>, vector<8x128xbf16>, vector<8x8xf32> -> vector<8x8xf32>
    %c0_14 = arith.constant 0 : index
    %c0_15 = arith.constant 0 : index
    %20 = vector.load %arg6[%c0_14, %c0_15] : memref<8x1xf32, #tpu.memory_space<vmem>>, vector<8x1xf32>
    %21 = vector.broadcast %20 : vector<8x1xf32> to vector<8x8xf32>
    %22 = arith.addf %19, %21 : vector<8x8xf32>
    %cst_16 = arith.constant 0.000000e+00 : f32
    %23 = vector.broadcast %cst_16 : f32 to vector<8x8xf32>
    %24 = arith.maximumf %22, %23 : vector<8x8xf32>
    %c0_17 = arith.constant 0 : index
    %c0_18 = arith.constant 0 : index
    %25 = vector.load %arg7[%c0_17, %c0_18] : memref<8x8xf32, #tpu.memory_space<vmem>>, vector<8x8xf32>
    tpu.vector_store %arg7[%c0_17, %c0_18], %24 {strides = array<i32>} : memref<8x8xf32, #tpu.memory_space<vmem>>, vector<8x8xf32>,
    return
  }
  func.func @transform_0(%arg0: i32) -> (i32, i32) {
    %c0_i32 = arith.constant 0 : i32
    %c0_i32_0 = arith.constant 0 : i32
    return %arg0, %c0_i32 : i32, i32
  }
  func.func @transform_1(%arg0: i32) -> (i32, i32) {
    %c0_i32 = arith.constant 0 : i32
    %c0_i32_0 = arith.constant 0 : i32
    %c0_i32_1 = arith.constant 0 : i32
    return %c0_i32, %c0_i32_0 : i32, i32
  }
  func.func @transform_2(%arg0: i32) -> (i32, i32) {
    %c0_i32 = arith.constant 0 : i32
    %c0_i32_0 = arith.constant 0 : i32
    %c0_i32_1 = arith.constant 0 : i32
    return %c0_i32, %c0_i32_0 : i32, i32
  }
  func.func @transform_3(%arg0: i32) -> (i32, i32) {
    %c0_i32 = arith.constant 0 : i32
    %c0_i32_0 = arith.constant 0 : i32
    %c0_i32_1 = arith.constant 0 : i32
    return %c0_i32, %c0_i32_0 : i32, i32
  }
  func.func @transform_4(%arg0: i32) -> (i32, i32) {
    %c0_i32 = arith.constant 0 : i32
    %c0_i32_0 = arith.constant 0 : i32
    %c0_i32_1 = arith.constant 0 : i32
    return %c0_i32, %c0_i32_0 : i32, i32
  }
  func.func @transform_5(%arg0: i32) -> (i32, i32) {
    %c0_i32 = arith.constant 0 : i32
    %c0_i32_0 = arith.constant 0 : i32
    %c0_i32_1 = arith.constant 0 : i32
    return %c0_i32, %c0_i32_0 : i32, i32
  }
  func.func @transform_6(%arg0: i32) -> (i32, i32) {
    %c0_i32 = arith.constant 0 : i32
    %c0_i32_0 = arith.constant 0 : i32
    return %c0_i32, %arg0 : i32, i32
  }
}

</mosaic_0001>

<llo_original>
// kernel: tpu_custom_call.1
$region0: #{tpu_custom_call.1}
  #allocation0 [shape = 'u32[]', space=smem, size = 0x4, offset = 0x4, fixed_abs, tag = 'smem constant byte address 0x4 - core index']
  #allocation1 [shape = 'u32[144,128]{1,0:T(1,128)}', space=vmem, size = 0x12000, scoped, tag = 'internal scratch']
  %s0 = inlined_call_operand.vmem [shape: f32[8,32], index: 0, kind: input, shape index: {}]
  %s1 = inlined_call_operand.hbm [shape: bf16[32,128], index: 1, kind: input, shape index: {}]
  %s2 = inlined_call_operand.hbm [shape: bf16[128,128], index: 2, kind: input, shape index: {}]
  %s3 = inlined_call_operand.vmem [shape: bf16[8,128], index: 3, kind: input, shape index: {}]
  %s4 = inlined_call_operand.vmem [shape: f32[8,128], index: 4, kind: input, shape index: {}]
  %s5 = inlined_call_operand.vmem [shape: f32[8,1], index: 5, kind: input, shape index: {}]
  %s6 = inlined_call_operand.hbm [shape: f32[8,8], index: 6, kind: output, shape index: {}]
  %s7 = sld [smem:[#allocation0]]
  $region42: #{tpu_custom_call.1} parent=0
    _
  %s9 = ssub.s32 1, %s7
  %s10 = scalar_select 0, %s9, %s7
  $region1: #{tpu_custom_call.1} parent=0
    #allocation2 [shape = 'u8[8192]{0}', space=vmem, size = 0x2000, scoped, tag = 'input window, operand 1, single buffered']
    #allocation3 [shape = 's32[1]{0}', space=sflag, size = 0x4, scoped, tag = 'scoped memory for tpu_custom_call.1']
    #allocation4 [shape = 's32[1]{0}', space=sflag, size = 0x4, scoped, tag = 'scoped memory for tpu_custom_call.1']
    #allocation5 [shape = 'u8[32768]{0}', space=vmem, size = 0x8000, scoped, tag = 'input window, operand 2, single buffered']
    #allocation6 [shape = 's32[1]{0}', space=sflag, size = 0x4, scoped, tag = 'scoped memory for tpu_custom_call.1']
    #allocation7 [shape = 'u8[4096]{0}', space=vmem, size = 0x1000, scoped, tag = 'output window, operand 0, single buffered']
    %11 = vsyncpa [#allocation3], 0
    %12 = vsyncpa [#allocation6], 0
    %13 = vsyncpa [#allocation4], 0
    // Predicated region
    $region2: #{tpu_custom_call.1} parent=1 // pred_check
      _
    $region3: #{tpu_custom_call.1} parent=1 // pred_check_branch
      %15 = sbr.rel (0) target = $region5
    $region4: #{tpu_custom_call.1} parent=1 // pred_region
      _
    $region5: #{tpu_custom_call.1} parent=1 // pred_fallthru
      _
    // Predicated region
    $region6: #{tpu_custom_call.1} parent=1 // pred_check
      _
    $region7: #{tpu_custom_call.1} parent=1 // pred_check_branch
      %17 = sbr.rel (0) target = $region9
    $region8: #{tpu_custom_call.1} parent=1 // pred_region
      %s19 = ssub.s32 256, 256
      %20 = vsyncadd [#allocation3], %s19
      %s21 = sshll.u32 [#allocation2], 4
      %s22 = int_to_ptr.vmem [resolvable:$true] %s21
      %27 = dma.hbm_to_vmem [thread:$0]  %s1, 256, %s22, [#allocation3], 64, 64, 4
    $region9: #{tpu_custom_call.1} parent=1 // pred_fallthru
      _
    // Predicated region
    $region10: #{tpu_custom_call.1} parent=1 // pred_check
      _
    $region11: #{tpu_custom_call.1} parent=1 // pred_check_branch
      %29 = sbr.rel (0) target = $region13
    $region12: #{tpu_custom_call.1} parent=1 // pred_region
      %s31 = ssub.s32 1024, 1024
      %32 = vsyncadd [#allocation6], %s31
      %s33 = sshll.u32 [#allocation5], 4
      %s34 = int_to_ptr.vmem [resolvable:$true] %s33
      %39 = dma.hbm_to_vmem [thread:$0]  %s2, 1024, %s34, [#allocation6], 64, 64, 4
    $region13: #{tpu_custom_call.1} parent=1 // pred_fallthru
      _
    // Predicated region
    $region14: #{tpu_custom_call.1} parent=1 // pred_check
      _
    $region15: #{tpu_custom_call.1} parent=1 // pred_check_branch
      %41 = sbr.rel (0) target = $region17
    $region16: #{tpu_custom_call.1} parent=1 // pred_region
      _
    $region17: #{tpu_custom_call.1} parent=1 // pred_fallthru
      _
    // Predicated region
    $region18: #{tpu_custom_call.1} parent=1 // pred_check
      _
    $region19: #{tpu_custom_call.1} parent=1 // pred_check_branch
      %43 = sbr.rel (0) target = $region21
    $region20: #{tpu_custom_call.1} parent=1 // pred_region
      _
    $region21: #{tpu_custom_call.1} parent=1 // pred_fallthru
      _
    // Predicated region
    $region22: #{tpu_custom_call.1} parent=1 // pred_check
      _
    $region23: #{tpu_custom_call.1} parent=1 // pred_check_branch
      %45 = sbr.rel (0) target = $region25
    $region24: #{tpu_custom_call.1} parent=1 // pred_region
      _
    $region25: #{tpu_custom_call.1} parent=1 // pred_fallthru
      _
    // Predicated region
    $region26: #{tpu_custom_call.1} parent=1 // pred_check
      _
    $region27: #{tpu_custom_call.1} parent=1 // pred_check_branch
      %47 = sbr.rel (0) target = $region29
    $region28: #{tpu_custom_call.1} parent=1 // pred_region
      %48 = dma.done [#allocation3], 256
    $region29: #{tpu_custom_call.1} parent=1 // pred_fallthru
      _
    // Predicated region
    $region30: #{tpu_custom_call.1} parent=1 // pred_check
      _
    $region31: #{tpu_custom_call.1} parent=1 // pred_check_branch
      %50 = sbr.rel (0) target = $region33
    $region32: #{tpu_custom_call.1} parent=1 // pred_region
      %51 = dma.done [#allocation6], 1024
    $region33: #{tpu_custom_call.1} parent=1 // pred_fallthru
      _
    %v53 = vld [vmem:[%s0] sm:$0xff]
    %v54 = vpack.c.bf16 %v53, %v53
    %v55 = vld [vmem:[#allocation2] sm:$0xf]
    %v56 = vld [vmem:[#allocation2 + $0x4] sm:$0xf]
    %v57 = vld [vmem:[#allocation2 + $0x8] sm:$0xf]
    %v58 = vld [vmem:[#allocation2 + $0xc] sm:$0xf]
    %v59 = vld [vmem:[%s4] sm:$0x1]
    %v60 = vlaneseq
    %v61 = vshrl.u32 %v60, 7
    %v62 = vsub.s32 0, %v61
    %v63 = vrot.slane %v59, %v62
    %v68 = vunpack.c.l.b16 %v55
    %v69 = vunpack.c.l.b16 %v56
    %v70 = vunpack.c.l.b16 %v57
    %v71 = vunpack.c.l.b16 %v58
    %v72 = vpack.c.b16 %v69, %v68
    %v73 = vpack.c.b16 %v71, %v70
    %vm76 = vcmask 261120
    %v78 = vsel %vm76, %v54, 0
    %80 = vmatprep.subr.bf16.mxu0 0
    %81 = vmatpush1.bf16.msra.mxu0 %v72
    %82 = vmatprep.subr.bf16.mxu0 0
    %83 = vmatpush1.bf16.msra.mxu0 %v73
    %84 = vmatprep.subr.bf16.mxu0 0
    %85 = vmatpush1.bf16.msra.mxu0 0
    %86 = vmatprep.subr.bf16.mxu0 0
    %87 = vmatpush1.bf16.msra.mxu0 0
    %88 = vmatprep.subr.bf16.mxu0 0
    %89 = vmatpush1.bf16.msra.mxu0 0
    %90 = vmatprep.subr.bf16.mxu0 0
    %91 = vmatpush1.bf16.msra.mxu0 0
    %92 = vmatprep.subr.bf16.mxu0 0
    %93 = vmatpush1.bf16.msra.mxu0 0
    %94 = vmatprep.subr.bf16.mxu0 0
    %95 = vmatpush1.bf16.msra.mxu0 0
    %96 = vmatprep.subr.bf16.mxu0 0
    %97 = vmatpush1.bf16.msra.mxu0 0
    %98 = vmatprep.subr.bf16.mxu0 0
    %99 = vmatpush1.bf16.msra.mxu0 0
    %100 = vmatprep.subr.bf16.mxu0 0
    %101 = vmatpush1.bf16.msra.mxu0 0
    %102 = vmatprep.subr.bf16.mxu0 0
    %103 = vmatpush1.bf16.msra.mxu0 0
    %104 = vmatprep.subr.bf16.mxu0 0
    %105 = vmatpush1.bf16.msra.mxu0 0
    %106 = vmatprep.subr.bf16.mxu0 0
    %107 = vmatpush1.bf16.msra.mxu0 0
    %108 = vmatprep.subr.bf16.mxu0 0
    %109 = vmatpush1.bf16.msra.mxu0 0
    %110 = vmatprep.subr.bf16.mxu0 0
    %111 = vmatpush1.bf16.msra.mxu0 0
    %112 = vmatprep.mubr.bf16.mxu0 0
    %113 = vmatmul.mubr.bf16.gmra.mrb[0].mxu0 %v78
    %v114 = vpop.f32.mrb[0].mxu0
    %v115 = vadd.f32 %v63, %v114
    %v116 = vpop.f32.mrb[0].mxu0
    %v117 = vpop.f32.mrb[0].mxu0
    %v118 = vpop.f32.mrb[0].mxu0
    %119 = vdwg.mxu0
    %v120 = vmax.f32 %v115, 0.0
    %v121 = vpack.c.bf16 %v120, %v120
    %v122 = vld [vmem:[#allocation5] sm:$0xf]
    %v123 = vld [vmem:[#allocation5 + $0x4] sm:$0xf]
    %v124 = vld [vmem:[#allocation5 + $0x8] sm:$0xf]
    %v125 = vld [vmem:[#allocation5 + $0xc] sm:$0xf]
    %v126 = vld [vmem:[#allocation5 + $0x10] sm:$0xf]
    %v127 = vld [vmem:[#allocation5 + $0x14] sm:$0xf]
    %v128 = vld [vmem:[#allocation5 + $0x18] sm:$0xf]
    %v129 = vld [vmem:[#allocation5 + $0x1c] sm:$0xf]
    %v130 = vld [vmem:[#allocation5 + $0x20] sm:$0xf]
    %v131 = vld [vmem:[#allocation5 + $0x24] sm:$0xf]
    %v132 = vld [vmem:[#allocation5 + $0x28] sm:$0xf]
    %v133 = vld [vmem:[#allocation5 + $0x2c] sm:$0xf]
    %v134 = vld [vmem:[#allocation5 + $0x30] sm:$0xf]
    %v135 = vld [vmem:[#allocation5 + $0x34] sm:$0xf]
    %v136 = vld [vmem:[#allocation5 + $0x38] sm:$0xf]
    %v137 = vld [vmem:[#allocation5 + $0x3c] sm:$0xf]
    %v138 = vld [vmem:[%s4 + $0x1] sm:$0x1]
    %v139 = vlaneseq
    %v140 = vshrl.u32 %v139, 7
    %v141 = vsub.s32 0, %v140
    %v142 = vrot.slane %v138, %v141
    %v159 = vunpack.c.l.b16 %v122
    %v160 = vunpack.c.l.b16 %v123
    %v161 = vunpack.c.l.b16 %v124
    %v162 = vunpack.c.l.b16 %v125
    %v163 = vunpack.c.l.b16 %v126
    %v164 = vunpack.c.l.b16 %v127
    %v165 = vunpack.c.l.b16 %v128
    %v166 = vunpack.c.l.b16 %v129
    %v167 = vunpack.c.l.b16 %v130
    %v168 = vunpack.c.l.b16 %v131
    %v169 = vunpack.c.l.b16 %v132
    %v170 = vunpack.c.l.b16 %v133
    %v171 = vunpack.c.l.b16 %v134
    %v172 = vunpack.c.l.b16 %v135
    %v173 = vunpack.c.l.b16 %v136
    %v174 = vunpack.c.l.b16 %v137
    %v175 = vpack.c.b16 %v160, %v159
    %v176 = vpack.c.b16 %v162, %v161
    %v177 = vpack.c.b16 %v164, %v163
    %v178 = vpack.c.b16 %v166, %v165
    %v179 = vpack.c.b16 %v168, %v167
    %v180 = vpack.c.b16 %v170, %v169
    %v181 = vpack.c.b16 %v172, %v171
    %v182 = vpack.c.b16 %v174, %v173
    %191 = vmatprep.subr.bf16.mxu0 0
    %192 = vmatpush1.bf16.msra.mxu0 %v175
    %193 = vmatprep.subr.bf16.mxu0 0
    %194 = vmatpush1.bf16.msra.mxu0 %v176
    %195 = vmatprep.subr.bf16.mxu0 0
    %196 = vmatpush1.bf16.msra.mxu0 %v177
    %197 = vmatprep.subr.bf16.mxu0 0
    %198 = vmatpush1.bf16.msra.mxu0 %v178
    %199 = vmatprep.subr.bf16.mxu0 0
    %200 = vmatpush1.bf16.msra.mxu0 %v179
    %201 = vmatprep.subr.bf16.mxu0 0
    %202 = vmatpush1.bf16.msra.mxu0 %v180
    %203 = vmatprep.subr.bf16.mxu0 0
    %204 = vmatpush1.bf16.msra.mxu0 %v181
    %205 = vmatprep.subr.bf16.mxu0 0
    %206 = vmatpush1.bf16.msra.mxu0 %v182
    %207 = vmatprep.subr.bf16.mxu0 0
    %208 = vmatpush1.bf16.msra.mxu0 0
    %209 = vmatprep.subr.bf16.mxu0 0
    %210 = vmatpush1.bf16.msra.mxu0 0
    %211 = vmatprep.subr.bf16.mxu0 0
    %212 = vmatpush1.bf16.msra.mxu0 0
    %213 = vmatprep.subr.bf16.mxu0 0
    %214 = vmatpush1.bf16.msra.mxu0 0
    %215 = vmatprep.subr.bf16.mxu0 0
    %216 = vmatpush1.bf16.msra.mxu0 0
    %217 = vmatprep.subr.bf16.mxu0 0
    %218 = vmatpush1.bf16.msra.mxu0 0
    %219 = vmatprep.subr.bf16.mxu0 0
    %220 = vmatpush1.bf16.msra.mxu0 0
    %221 = vmatprep.subr.bf16.mxu0 0
    %222 = vmatpush1.bf16.msra.mxu0 0
    %223 = vmatprep.mubr.bf16.mxu0 0
    %224 = vmatmul.mubr.bf16.gmra.mrb[0].mxu0 %v121
    %v225 = vpop.f32.mrb[0].mxu0
    %v226 = vadd.f32 %v142, %v225
    %v227 = vpop.f32.mrb[0].mxu0
    %v228 = vpop.f32.mrb[0].mxu0
    %v229 = vpop.f32.mrb[0].mxu0
    %230 = vdwg.mxu0
    %v231 = vmax.f32 %v226, 0.0
    %v232 = vld [vmem:[%s3] sm:$0xf]
    %v233 = vpack.c.bf16 %v231, %v231
    %v234 = vld [vmem:[%s5] sm:$0xff]
    %236 = vset.pattern.permute.xlu0 0
    %237 = vperm.xlu0 %236, %v234
    %v238 = vpop.permute.xlu0 %237
    %240 = vmatprep.subr.bf16.mxu0 0
    %241 = vmatpush1.bf16.xpose.msra.mxu0 %v233
    %242 = vmatprep.subr.bf16.mxu0 0
    %243 = vmatpush1.bf16.xpose.msra.mxu0 0
    %244 = vmatprep.subr.bf16.mxu0 0
    %245 = vmatpush1.bf16.xpose.msra.mxu0 0
    %246 = vmatprep.subr.bf16.mxu0 0
    %247 = vmatpush1.bf16.xpose.msra.mxu0 0
    %248 = vmatprep.subr.bf16.mxu0 0
    %249 = vmatpush1.bf16.xpose.msra.mxu0 0
    %250 = vmatprep.subr.bf16.mxu0 0
    %251 = vmatpush1.bf16.xpose.msra.mxu0 0
    %252 = vmatprep.subr.bf16.mxu0 0
    %253 = vmatpush1.bf16.xpose.msra.mxu0 0
    %254 = vmatprep.subr.bf16.mxu0 0
    %255 = vmatpush1.bf16.xpose.msra.mxu0 0
    %256 = vmatprep.subr.bf16.mxu0 0
    %257 = vmatpush1.bf16.xpose.msra.mxu0 0
    %258 = vmatprep.subr.bf16.mxu0 0
    %259 = vmatpush1.bf16.xpose.msra.mxu0 0
    %260 = vmatprep.subr.bf16.mxu0 0
    %261 = vmatpush1.bf16.xpose.msra.mxu0 0
    %262 = vmatprep.subr.bf16.mxu0 0
    %263 = vmatpush1.bf16.xpose.msra.mxu0 0
    %264 = vmatprep.subr.bf16.mxu0 0
    %265 = vmatpush1.bf16.xpose.msra.mxu0 0
    %266 = vmatprep.subr.bf16.mxu0 0
    %267 = vmatpush1.bf16.xpose.msra.mxu0 0
    %268 = vmatprep.subr.bf16.mxu0 0
    %269 = vmatpush1.bf16.xpose.msra.mxu0 0
    %270 = vmatprep.subr.bf16.mxu0 0
    %271 = vmatpush1.bf16.xpose.msra.mxu0 0
    %272 = vmatprep.mubr.bf16.mxu0 0
    %273 = vmatmul.mubr.bf16.gmra.mrb[0].mxu0 %v232
    %v274 = vpop.f32.mrb[0].mxu0
    %v275 = vadd.f32 %v238, %v274
    %v276 = vpop.f32.mrb[0].mxu0
    %v277 = vpop.f32.mrb[0].mxu0
    %v278 = vpop.f32.mrb[0].mxu0
    %279 = vdwg.mxu0
    %v280 = vmax.f32 %v275, 0.0
    %vm281 = vcmask 64512
    %282 = vst.msk [vmem:[#allocation7] sm:$0xff] %vm281, %v280
    // Predicated region
    $region34: #{tpu_custom_call.1} parent=1 // pred_check
      _
    $region35: #{tpu_custom_call.1} parent=1 // pred_check_branch
      %284 = sbr.rel (0) target = $region37
    $region36: #{tpu_custom_call.1} parent=1 // pred_region
      %s286 = ssub.s32 128, 128
      %287 = vsyncadd [#allocation4], %s286
      %s289 = sshll.u32 [#allocation7], 4
      %s290 = int_to_ptr.vmem [resolvable:$true] %s289
      %292 = dma.vmem_to_hbm [thread:$0]  %s290, 128, %s6, [#allocation4]
    $region37: #{tpu_custom_call.1} parent=1 // pred_fallthru
      _
    // Predicated region
    $region38: #{tpu_custom_call.1} parent=1 // pred_check
      _
    $region39: #{tpu_custom_call.1} parent=1 // pred_check_branch
      %294 = sbr.rel (0) target = $region41
    $region40: #{tpu_custom_call.1} parent=1 // pred_region
      %295 = dma.done [#allocation4], 128
    $region41: #{tpu_custom_call.1} parent=1 // pred_fallthru
      _
    %296 = vsyncpa [#allocation3], 1
    %297 = vsyncpa [#allocation6], 1
    %298 = vsyncpa [#allocation4], 1

</llo_original>
